<compile_context>
chip_gen: v7x
topology: tpu7x:2x2x1
jax: 0.10.0
libtpu: 0.0.40
codegen_flags: <defaults>
</compile_context>

<pallas_src>
import functools
import math

import jax
import jax.numpy as jnp
from jax.experimental import pallas as pl
from jax.experimental.pallas import tpu as pltpu

# Safe on every generation: 48 MiB scoped VMEM (< 64 MiB v7x physical,
# << 128 MiB v5e/v6e physical); 12 MiB of x+out per grid step -> 24 MiB
# double-buffered, leaving >= 24 MiB headroom for elementwise intermediates.
_VMEM_LIMIT_BYTES = 48 << 20
_STEP_BYTES = 12 << 20            # combined x + out bytes per grid step (primary)
_STEP_BYTES_FALLBACK = 6 << 20    # combined x + pe + out bytes (fallback)


def make_pe(embed_dim: int, max_len: int = 5000) -> jnp.ndarray:
    """Deterministic PE buffer, identical to the torch make_pe. (1, max_len, E) f32."""
    pos = jnp.arange(max_len, dtype=jnp.float32)[:, None]           # (L, 1)
    i = jnp.arange(embed_dim, dtype=jnp.float32)[None, :]           # (1, E)
    even_mask = (jnp.arange(embed_dim) % 2) == 0                    # (E,)
    denom_even = 10000.0 ** (i / embed_dim)
    denom_odd = 10000.0 ** ((i - 1.0) / embed_dim)
    denom = jnp.where(even_mask[None, :], denom_even, denom_odd)
    res = pos / denom
    pe = jnp.where(even_mask[None, :], jnp.sin(res), jnp.cos(res))
    return pe[None, :, :]


def _round_up(x: int, m: int) -> int:
    return ((x + m - 1) // m) * m


def _choose_seq_tile(seq_len: int, row_bytes: int, sublane: int,
                     step_bytes: int, batch: int) -> int:
    """Rows per sequence tile: biggest sublane-aligned tile under step_bytes."""
    rows = max(sublane, step_bytes // max(1, row_bytes))
    rows = (rows // sublane) * sublane
    ts = seq_len if rows >= seq_len else rows     # full-extent or aligned tile
    # v7x megacore: with a single batch element, make sure there are >= 2 tiles.
    if batch == 1 and seq_len > sublane:
        half = _round_up(pl.cdiv(seq_len, 2), sublane)
        if sublane <= half < ts:
            ts = half
    return max(1, ts)


def _lane_constants(embed_dim: int, fold: int):
    """Tiny (1, 1, fold*E) f32 per-lane constants for in-kernel PE generation."""
    e = jnp.arange(embed_dim, dtype=jnp.float32)
    even = (jnp.arange(embed_dim) % 2) == 0
    e_adj = jnp.where(even, e, e - 1.0)
    inv_denom = 1.0 / (10000.0 ** (e_adj / embed_dim))   # same denom as make_pe
    even_f = even.astype(jnp.float32)
    inv_t = jnp.tile(inv_denom, (fold,))[None, None, :]
    even_t = jnp.tile(even_f, (fold,))[None, None, :]
    # lane l of a folded row corresponds to position offset l // E
    off_t = jnp.repeat(jnp.arange(fold, dtype=jnp.float32),
                       embed_dim)[None, None, :]
    return inv_t, even_t, off_t


# --------------------------------------------------------------------------
# Primary kernel: PE generated on-chip (no pe HBM stream at all).
# --------------------------------------------------------------------------
def _pe_generate_kernel(x_ref, inv_ref, even_ref, off_ref, o_ref, *, ts, fold):
    s = pl.program_id(1)                                   # sequence-tile index
    # global (folded) row index of every element in this tile
    rows = jax.lax.broadcasted_iota(jnp.int32, x_ref.shape, 1)
    pos = ((rows + s * ts) * fold).astype(jnp.float32) + off_ref[...]
    res = pos * inv_ref[...]
    w = even_ref[...]                                      # 1.0 on even lanes
    # exact arithmetic select (w is exactly 0/1); sin/cos run on the idle EUP
    pe = w * jnp.sin(res) + (1.0 - w) * jnp.cos(res)
    o_ref[...] = x_ref[...].astype(o_ref.dtype) + pe.astype(o_ref.dtype)


def _forward_generated(x, out_dtype, alias_x):
    B, S, E = x.shape
    # Lane-dense folding for sub-128 embed dims (review: avoid masked vst.msk).
    fold = 1
    if E % 128 != 0:
        k = 128 // math.gcd(E, 128)
        if k > 1 and S % k == 0:
            fold = k
    Sf, Ef = S // fold, E * fold
    xf = x.reshape(B, Sf, Ef)                 # contiguous reshape: layout plumbing only
    inv_c, even_c, off_c = _lane_constants(E, fold)

    sublane = max(8, 32 // jnp.dtype(x.dtype).itemsize,
                  32 // jnp.dtype(out_dtype).itemsize)
    row_bytes = Ef * (jnp.dtype(x.dtype).itemsize + jnp.dtype(out_dtype).itemsize)
    ts = _choose_seq_tile(Sf, row_bytes, sublane, _STEP_BYTES, B)
    nst = pl.cdiv(Sf, ts)

    kwargs = {}
    if alias_x and jnp.dtype(out_dtype) == jnp.dtype(x.dtype):
        kwargs["input_output_aliases"] = {0: 0}

    kernel = functools.partial(_pe_generate_kernel, ts=ts, fold=fold)
    outf = pl.pallas_call(
        kernel,
        out_shape=jax.ShapeDtypeStruct((B, Sf, Ef), out_dtype),
        grid_spec=pltpu.PrefetchScalarGridSpec(
            num_scalar_prefetch=0,
            grid=(B, nst),
            in_specs=[
                pl.BlockSpec((1, ts, Ef), lambda b, s: (b, s, 0)),   # x tile
                # Tiny per-lane constants: block index constant across the whole
                # grid, so their DMA is issued once and elided afterwards.
                pl.BlockSpec((1, 1, Ef), lambda b, s: (0, 0, 0)),    # 1/denom
                pl.BlockSpec((1, 1, Ef), lambda b, s: (0, 0, 0)),    # even mask
                pl.BlockSpec((1, 1, Ef), lambda b, s: (0, 0, 0)),    # pos offset
            ],
            out_specs=pl.BlockSpec((1, ts, Ef), lambda b, s: (b, s, 0)),
        ),
        compiler_params=pltpu.CompilerParams(
            dimension_semantics=("parallel", "parallel"),
            vmem_limit_bytes=_VMEM_LIMIT_BYTES),
        **kwargs,
    )(xf, inv_c, even_c, off_c)
    return outf.reshape(B, S, E)


# --------------------------------------------------------------------------
# Fallback kernel: streamed precomputed pe.  Batch is the innermost grid axis
# and pe's block index is constant across it, so the pe tile is fetched from
# HBM once per sequence tile (not once per batch element).
# --------------------------------------------------------------------------
def _pe_stream_kernel(x_ref, pe_ref, o_ref):
    o_ref[...] = x_ref[...].astype(o_ref.dtype) + pe_ref[...].astype(o_ref.dtype)


def _forward_streamed(x, pe, out_dtype, alias_x):
    B, S, E = x.shape
    max_len = pe.shape[1]
    sublane = max(8, 32 // jnp.dtype(x.dtype).itemsize,
                  32 // jnp.dtype(pe.dtype).itemsize,
                  32 // jnp.dtype(out_dtype).itemsize)
    bpe = (jnp.dtype(x.dtype).itemsize + jnp.dtype(pe.dtype).itemsize
           + jnp.dtype(out_dtype).itemsize)
    rows = max(sublane, _STEP_BYTES_FALLBACK // max(1, E * bpe))
    rows = (rows // sublane) * sublane
    ts = min(rows, _round_up(S, sublane))
    ts = min(ts, max(sublane, (max_len // sublane) * sublane))   # never exceed pe
    ts = max(sublane, ts)
    nst = pl.cdiv(S, ts)

    kwargs = {}
    if alias_x and jnp.dtype(out_dtype) == jnp.dtype(x.dtype):
        kwargs["input_output_aliases"] = {0: 0}

    return pl.pallas_call(
        _pe_stream_kernel,
        out_shape=jax.ShapeDtypeStruct((B, S, E), out_dtype),
        grid_spec=pltpu.PrefetchScalarGridSpec(
            num_scalar_prefetch=0,
            grid=(nst, B),                       # batch innermost -> pe DMA elided
            in_specs=[pl.BlockSpec((1, ts, E), lambda s, b: (b, s, 0)),
                      pl.BlockSpec((1, ts, E), lambda s, b: (0, s, 0))],
            out_specs=pl.BlockSpec((1, ts, E), lambda s, b: (b, s, 0)),
        ),
        compiler_params=pltpu.CompilerParams(
            dimension_semantics=("parallel", "parallel"),
            vmem_limit_bytes=32 << 20),
        **kwargs,
    )(x, pe)


# --------------------------------------------------------------------------
# Public forward
# --------------------------------------------------------------------------
def positional_encoding_forward(x: jnp.ndarray, pe: jnp.ndarray, *,
                                out_dtype=None, alias_x: bool = False,
                                generate_pe_in_kernel: bool = True) -> jnp.ndarray:
    """PositionalEncoding.forward: x + pe[..., :seq, :].

    x : [B, S, E] or [S, E];  pe : [1, max_len, E] (from make_pe).
    out_dtype: optional override (e.g. x.dtype for the opt-in bf16 fast path);
               default matches torch promotion (bf16 x + f32 buffer -> f32).
    """
    squeeze_back = False
    if x.ndim == 2:
        x = x[None, :, :]
        squeeze_back = True
    B, S, E = x.shape
    _, max_len, pe_e = pe.shape
    if S > max_len:
        raise ValueError(f"sequence length {S} exceeds pe max_len {max_len}")
    if pe_e != E:
        raise ValueError(f"embed dim mismatch: x has {E}, pe has {pe_e}")
    if out_dtype is None:
        out_dtype = jnp.result_type(x.dtype, pe.dtype)

    out = None
    if generate_pe_in_kernel:
        try:
            out = _forward_generated(x, out_dtype, alias_x)
        except Exception:      # safety net: fall back to the streamed-pe kernel
            out = None
    if out is None:
        out = _forward_streamed(x, pe, out_dtype, alias_x)

    return out[0] if squeeze_back else out


if __name__ == "__main__":
    key = jax.random.PRNGKey(0)
    E, max_len = 32, 64
    pe = make_pe(E, max_len)

    def check(out, ref, msg):
        assert out.shape == ref.shape, msg + " (shape)"
        assert jnp.allclose(out, ref, atol=1e-5, rtol=1e-5), msg

    # 3-D input, foldable E (32 -> fold 4 -> lane-dense 128-wide stores)
    B, S = 2, 8
    x3 = jax.random.normal(key, (B, S, E), dtype=jnp.float32)
    out3 = jax.block_until_ready(positional_encoding_forward(x3, pe))
    check(out3, x3 + pe[:, :S, :], "3D mismatch")

    # 2-D input (torch: x + pe[0, :S, :])
    x2 = jax.random.normal(jax.random.fold_in(key, 1), (S, E), dtype=jnp.float32)
    out2 = jax.block_until_ready(positional_encoding_forward(x2, pe))
    check(out2, x2 + pe[0, :S, :], "2D mismatch")

    # Non-foldable ragged length (S=10 % 4 != 0 -> unfolded path, 2 seq tiles)
    x_r = jax.random.normal(jax.random.fold_in(key, 2), (1, 10, E), jnp.float32)
    out_r = jax.block_until_ready(positional_encoding_forward(x_r, pe))
    check(out_r, x_r + pe[:, :10, :], "ragged mismatch")

    # Foldable ragged length (S=12 -> folded (1, 3, 128))
    x_f = jax.random.normal(jax.random.fold_in(key, 3), (1, 12, E), jnp.float32)
    out_f = jax.block_until_ready(positional_encoding_forward(x_f, pe))
    check(out_f, x_f + pe[:, :12, :], "fold ragged mismatch")

    # bf16 input promotes to f32 (matches torch bf16 + f32-buffer promotion)
    x_bf = x3.astype(jnp.bfloat16)
    out_bf = jax.block_until_ready(positional_encoding_forward(x_bf, pe))
    assert out_bf.dtype == jnp.float32, "promotion dtype mismatch"
    check(out_bf, x_bf.astype(jnp.float32) + pe[:, :S, :], "bf16 promotion mismatch")

    # E already a multiple of 128 -> natively lane-dense, no folding
    E2 = 128
    pe2 = make_pe(E2, 32)
    x_l = jax.random.normal(jax.random.fold_in(key, 4), (1, 16, E2), jnp.float32)
    out_l = jax.block_until_ready(positional_encoding_forward(x_l, pe2))
    check(out_l, x_l + pe2[:, :16, :], "E=128 mismatch")

    print("KERNEL_OK")
</pallas_src>

<mosaic_0001>
module attributes {stable_mosaic.version = 11 : i64} {
  func.func @_pe_generate_kernel(%arg0: i32, %arg1: i32, %arg2: memref<1x2x128xf32, #tpu.memory_space<vmem>>, %arg3: memref<1x1x128xf32, #tpu.memory_space<vmem>>, %arg4: memref<1x1x128xf32, #tpu.memory_space<vmem>>, %arg5: memref<1x1x128xf32, #tpu.memory_space<vmem>>, %arg6: memref<1x2x128xf32, #tpu.memory_space<vmem>>) attributes {dimension_semantics = [#tpu.dimension_semantics<parallel>, #tpu.dimension_semantics<parallel>], iteration_bounds = array<i64: 2, 1>, scalar_prefetch = 0 : i64, scratch_operands = 0 : i64, tpu.core_type = #tpu.core_type<tc>, window_params = [{transform_indices = @transform_0, window_bounds = array<i64: 1, 2, 128>}, {pipeline_mode = #tpu.pipeline_mode<synchronous>, transform_indices = @transform_1, window_bounds = array<i64: 1, 1, 128>}, {pipeline_mode = #tpu.pipeline_mode<synchronous>, transform_indices = @transform_2, window_bounds = array<i64: 1, 1, 128>}, {pipeline_mode = #tpu.pipeline_mode<synchronous>, transform_indices = @transform_3, window_bounds = array<i64: 1, 1, 128>}, {transform_indices = @transform_4, window_bounds = array<i64: 1, 2, 128>}]} {
    %0 = tpu.iota {dimensions = array<i32: 1>} : vector<1x2x128xi32>
    %c2_i32 = arith.constant 2 : i32
    %1 = arith.muli %arg1, %c2_i32 : i32
    %2 = vector.broadcast %1 : i32 to vector<1x2x128xi32>
    %3 = arith.addi %0, %2 : vector<1x2x128xi32>
    %c4_i32 = arith.constant 4 : i32
    %4 = vector.broadcast %c4_i32 : i32 to vector<1x2x128xi32>
    %5 = arith.muli %3, %4 : vector<1x2x128xi32>
    %6 = arith.sitofp %5 : vector<1x2x128xi32> to vector<1x2x128xf32>
    %c0 = arith.constant 0 : index
    %c0_0 = arith.constant 0 : index
    %c0_1 = arith.constant 0 : index
    %7 = vector.load %arg5[%c0, %c0_0, %c0_1] : memref<1x1x128xf32, #tpu.memory_space<vmem>>, vector<1x1x128xf32>
    %8 = vector.broadcast %7 : vector<1x1x128xf32> to vector<1x2x128xf32>
    %9 = arith.addf %6, %8 : vector<1x2x128xf32>
    %c0_2 = arith.constant 0 : index
    %c0_3 = arith.constant 0 : index
    %c0_4 = arith.constant 0 : index
    %10 = vector.load %arg3[%c0_2, %c0_3, %c0_4] : memref<1x1x128xf32, #tpu.memory_space<vmem>>, vector<1x1x128xf32>
    %11 = vector.broadcast %10 : vector<1x1x128xf32> to vector<1x2x128xf32>
    %12 = arith.mulf %9, %11 : vector<1x2x128xf32>
    %c0_5 = arith.constant 0 : index
    %c0_6 = arith.constant 0 : index
    %c0_7 = arith.constant 0 : index
    %13 = vector.load %arg4[%c0_5, %c0_6, %c0_7] : memref<1x1x128xf32, #tpu.memory_space<vmem>>, vector<1x1x128xf32>
    %14 = math.sin %12 : vector<1x2x128xf32>
    %15 = vector.broadcast %13 : vector<1x1x128xf32> to vector<1x2x128xf32>
    %16 = arith.mulf %15, %14 : vector<1x2x128xf32>
    %cst = arith.constant 1.000000e+00 : f32
    %17 = vector.broadcast %cst : f32 to vector<1x1x128xf32>
    %18 = arith.subf %17, %13 : vector<1x1x128xf32>
    %19 = math.cos %12 : vector<1x2x128xf32>
    %20 = vector.broadcast %18 : vector<1x1x128xf32> to vector<1x2x128xf32>
    %21 = arith.mulf %20, %19 : vector<1x2x128xf32>
    %22 = arith.addf %16, %21 : vector<1x2x128xf32>
    %c0_8 = arith.constant 0 : index
    %c0_9 = arith.constant 0 : index
    %c0_10 = arith.constant 0 : index
    %23 = vector.load %arg2[%c0_8, %c0_9, %c0_10] : memref<1x2x128xf32, #tpu.memory_space<vmem>>, vector<1x2x128xf32>
    %24 = arith.addf %23, %22 : vector<1x2x128xf32>
    %c0_11 = arith.constant 0 : index
    %c0_12 = arith.constant 0 : index
    %c0_13 = arith.constant 0 : index
    %25 = vector.load %arg6[%c0_11, %c0_12, %c0_13] : memref<1x2x128xf32, #tpu.memory_space<vmem>>, vector<1x2x128xf32>
    tpu.vector_store %arg6[%c0_11, %c0_12, %c0_13], %24 {strides = array<i32>} : memref<1x2x128xf32, #tpu.memory_space<vmem>>, vector<1x2x128xf32>,
    return
  }
  func.func @transform_0(%arg0: i32, %arg1: i32) -> (i32, i32, i32) {
    %c0_i32 = arith.constant 0 : i32
    %c0_i32_0 = arith.constant 0 : i32
    return %arg0, %arg1, %c0_i32 : i32, i32, i32
  }
  func.func @transform_1(%arg0: i32, %arg1: i32) -> (i32, i32, i32) {
    %c0_i32 = arith.constant 0 : i32
    %c0_i32_0 = arith.constant 0 : i32
    %c0_i32_1 = arith.constant 0 : i32
    %c0_i32_2 = arith.constant 0 : i32
    return %c0_i32, %c0_i32_0, %c0_i32_1 : i32, i32, i32
  }
  func.func @transform_2(%arg0: i32, %arg1: i32) -> (i32, i32, i32) {
    %c0_i32 = arith.constant 0 : i32
    %c0_i32_0 = arith.constant 0 : i32
    %c0_i32_1 = arith.constant 0 : i32
    %c0_i32_2 = arith.constant 0 : i32
    return %c0_i32, %c0_i32_0, %c0_i32_1 : i32, i32, i32
  }
  func.func @transform_3(%arg0: i32, %arg1: i32) -> (i32, i32, i32) {
    %c0_i32 = arith.constant 0 : i32
    %c0_i32_0 = arith.constant 0 : i32
    %c0_i32_1 = arith.constant 0 : i32
    %c0_i32_2 = arith.constant 0 : i32
    return %c0_i32, %c0_i32_0, %c0_i32_1 : i32, i32, i32
  }
  func.func @transform_4(%arg0: i32, %arg1: i32) -> (i32, i32, i32) {
    %c0_i32 = arith.constant 0 : i32
    %c0_i32_0 = arith.constant 0 : i32
    return %arg0, %arg1, %c0_i32 : i32, i32, i32
  }
}

module attributes {stable_mosaic.version = 11 : i64} {
  func.func @_pe_stream_kernel(%arg0: i32, %arg1: i32, %arg2: memref<1x8x32xf32, #tpu.memory_space<vmem>>, %arg3: memref<1x8x32xf32, #tpu.memory_space<vmem>>, %arg4: memref<1x8x32xf32, #tpu.memory_space<vmem>>) attributes {dimension_semantics = [#tpu.dimension_semantics<parallel>, #tpu.dimension_semantics<parallel>], iteration_bounds = array<i64: 1, 2>, scalar_prefetch = 0 : i64, scratch_operands = 0 : i64, tpu.core_type = #tpu.core_type<tc>, window_params = [{transform_indices = @transform_0, window_bounds = array<i64: 1, 8, 32>}, {transform_indices = @transform_1, window_bounds = array<i64: 1, 8, 32>}, {transform_indices = @transform_2, window_bounds = array<i64: 1, 8, 32>}]} {
    %c0 = arith.constant 0 : index
    %c0_0 = arith.constant 0 : index
    %c0_1 = arith.constant 0 : index
    %0 = vector.load %arg2[%c0, %c0_0, %c0_1] : memref<1x8x32xf32, #tpu.memory_space<vmem>>, vector<1x8x32xf32>
    %c0_2 = arith.constant 0 : index
    %c0_3 = arith.constant 0 : index
    %c0_4 = arith.constant 0 : index
    %1 = vector.load %arg3[%c0_2, %c0_3, %c0_4] : memref<1x8x32xf32, #tpu.memory_space<vmem>>, vector<1x8x32xf32>
    %2 = arith.addf %0, %1 : vector<1x8x32xf32>
    %c0_5 = arith.constant 0 : index
    %c0_6 = arith.constant 0 : index
    %c0_7 = arith.constant 0 : index
    %3 = vector.load %arg4[%c0_5, %c0_6, %c0_7] : memref<1x8x32xf32, #tpu.memory_space<vmem>>, vector<1x8x32xf32>
    tpu.vector_store %arg4[%c0_5, %c0_6, %c0_7], %2 {strides = array<i32>} : memref<1x8x32xf32, #tpu.memory_space<vmem>>, vector<1x8x32xf32>,
    return
  }
  func.func @transform_0(%arg0: i32, %arg1: i32) -> (i32, i32, i32) {
    %c0_i32 = arith.constant 0 : i32
    %c0_i32_0 = arith.constant 0 : i32
    return %arg1, %arg0, %c0_i32 : i32, i32, i32
  }
  func.func @transform_1(%arg0: i32, %arg1: i32) -> (i32, i32, i32) {
    %c0_i32 = arith.constant 0 : i32
    %c0_i32_0 = arith.constant 0 : i32
    %c0_i32_1 = arith.constant 0 : i32
    return %c0_i32, %arg0, %c0_i32_0 : i32, i32, i32
  }
  func.func @transform_2(%arg0: i32, %arg1: i32) -> (i32, i32, i32) {
    %c0_i32 = arith.constant 0 : i32
    %c0_i32_0 = arith.constant 0 : i32
    return %arg1, %arg0, %c0_i32 : i32, i32, i32
  }
}

</mosaic_0001>

<llo_original>
// kernel: tpu_custom_call.1
$region0: #{tpu_custom_call.1}
  #allocation0 [shape = 'u32[]', space=smem, size = 0x4, offset = 0x4, fixed_abs, tag = 'smem constant byte address 0x4 - core index']
  #allocation1 [shape = 'u32[144,128]{1,0:T(1,128)}', space=vmem, size = 0x12000, scoped, tag = 'internal scratch']
  %s0 = inlined_call_operand.hbm [shape: f32[2,2,128], index: 0, kind: input, shape index: {}]
  %s1 = inlined_call_operand.vmem [shape: f32[1,1,128], index: 1, kind: input, shape index: {}]
  %s2 = inlined_call_operand.vmem [shape: f32[1,1,128], index: 2, kind: input, shape index: {}]
  %s3 = inlined_call_operand.vmem [shape: f32[1,1,128], index: 3, kind: input, shape index: {}]
  %s4 = inlined_call_operand.hbm [shape: f32[2,2,128], index: 4, kind: output, shape index: {}]
  %s5 = sld [smem:[#allocation0]]
  $region53: #{tpu_custom_call.1} parent=0
    _
  %s7 = ssub.s32 1, %s5
  %s8 = scalar_select 0, %s7, %s5
  $region1: #{tpu_custom_call.1} parent=0
    #allocation2 [shape = 'u8[2048]{0}', space=vmem, size = 0x800, scoped, tag = 'input window, operand 0']
    #allocation3 [shape = 's32[2]{0}', space=sflag, size = 0x8, scoped, tag = 'scoped memory for tpu_custom_call.1']
    #allocation4 [shape = 's32[2]{0}', space=sflag, size = 0x8, scoped, tag = 'scoped memory for tpu_custom_call.1']
    #allocation5 [shape = 'u8[2048]{0}', space=vmem, size = 0x800, scoped, tag = 'output window, operand 0']
    %9 = vsyncpa [#allocation3], 0
    %s10 = scalar_lea.sflag [#allocation3], 1
    %11 = vsyncpa %s10, 0
    %12 = vsyncpa [#allocation4], 0
    %s13 = scalar_lea.sflag [#allocation4], 1
    %14 = vsyncpa %s13, 0
    loop: start=0, step=1, limit=4
    $region2: #{tpu_custom_call.1} parent=1 // loop_pre_header
      _
    $region3: #{tpu_custom_call.1} parent=1 // loop_header
      %s16 = sphi 0, %s20
      %p17 = scmp.ge.s32.totalorder %s16, 4
      %s23 = sphi 0, %s35
      %s24 = sphi 0, %s31
      %s25 = sphi 0, %s23
      %s26 = sphi 0, %s24
      %s27 = sphi 0, %s25
      %s28 = sphi 0, %s26
      %s40 = sphi 0, %s42
      %s43 = sphi 0, %s40
      %s44 = sphi 0, %s43
      %s60 = sphi 0, %s44
      %s64 = sphi 0, %s64
      %s66 = sphi 0, %s64
      %s67 = sphi 0, %s66
      %s81 = sphi 0, %s67
      %s85 = sphi 0, %s85
      %s87 = sphi 0, %s85
      %s88 = sphi 0, %s87
      %s102 = sphi 0, %s88
      %s106 = sphi 0, %s106
      %s108 = sphi 0, %s106
      %s109 = sphi 0, %s108
      %s123 = sphi 0, %s109
      %s131 = sphi 0, %s133
      %s134 = sphi 0, %s131
      %s135 = sphi 0, %s134
      %s151 = sphi 0, %s135
    $region4: #{tpu_custom_call.1} parent=1 // loop_header_branch
      %19 = sbr.rel (%p17) target = $region8
    $region5: #{tpu_custom_call.1} parent=1 // loop_body
      %s21 = ssub.s32 %s16, 1
      %s22 = ssub.s32 %s16, 2
      %s29 = sadd.s32 1, %s24
      %p30 = scmp.ge.s32.totalorder %s29, 1
      %s31 = scalar_select %p30, 0, %s29
      %s32 = sadd.s32 1, %s23
      %s33 = scalar_select %p30, %s32, %s23
      %p34 = scmp.ge.s32.totalorder %s33, 2
      %s35 = scalar_select %p34, 0, %s33
      %s36 = ssub.s32 %s23, %s35
      %s37 = ssub.s32 %s24, %s31
      %s38 = sor.u32 %s36, %s37
      %p39 = scmp.eq.s32.totalorder %s38, 0
      %s41 = sadd.s32 %s40, 1
      %s42 = scalar_select %p39, %s40, %s41
      %p45 = pneg %p39
      %p46 = scmp.eq.s32.totalorder %s16, 1
      %p47 = por %p45, %p46
      %p48 = scmp.ne.s32.totalorder %s40, %s43
      %p49 = scmp.eq.s32.totalorder %s16, 0
      %p50 = por %p48, %p49
      %p51 = scmp.ne.s32.totalorder %s40, %s43
      %p52 = scmp.eq.s32.totalorder %s21, 1
      %p53 = por %p51, %p52
      %p54 = scmp.ne.s32.totalorder %s43, %s44
      %p55 = scmp.eq.s32.totalorder %s21, 0
      %p56 = por %p54, %p55
      %p57 = scmp.ne.s32.totalorder %s43, %s44
      %p58 = scmp.eq.s32.totalorder %s22, 1
      %p59 = por %p57, %p58
      %p61 = scmp.ne.s32.totalorder %s44, %s60
      %p62 = scmp.eq.s32.totalorder %s22, 0
      %p63 = por %p61, %p62
      %s65 = sadd.s32 %s64, 1
      %p68 = scmp.eq.s32.totalorder %s16, 1
      %p69 = scmp.ne.s32.totalorder %s64, %s66
      %p70 = scmp.eq.s32.totalorder %s16, 0
      %p71 = por %p69, %p70
      %p72 = scmp.ne.s32.totalorder %s64, %s66
      %p73 = scmp.eq.s32.totalorder %s21, 1
      %p74 = por %p72, %p73
      %p75 = scmp.ne.s32.totalorder %s66, %s67
      %p76 = scmp.eq.s32.totalorder %s21, 0
      %p77 = por %p75, %p76
      %p78 = scmp.ne.s32.totalorder %s66, %s67
      %p79 = scmp.eq.s32.totalorder %s22, 1
      %p80 = por %p78, %p79
      %p82 = scmp.ne.s32.totalorder %s67, %s81
      %p83 = scmp.eq.s32.totalorder %s22, 0
      %p84 = por %p82, %p83
      %s86 = sadd.s32 %s85, 1
      %p89 = scmp.eq.s32.totalorder %s16, 1
      %p90 = scmp.ne.s32.totalorder %s85, %s87
      %p91 = scmp.eq.s32.totalorder %s16, 0
      %p92 = por %p90, %p91
      %p93 = scmp.ne.s32.totalorder %s85, %s87
      %p94 = scmp.eq.s32.totalorder %s21, 1
      %p95 = por %p93, %p94
      %p96 = scmp.ne.s32.totalorder %s87, %s88
      %p97 = scmp.eq.s32.totalorder %s21, 0
      %p98 = por %p96, %p97
      %p99 = scmp.ne.s32.totalorder %s87, %s88
      %p100 = scmp.eq.s32.totalorder %s22, 1
      %p101 = por %p99, %p100
      %p103 = scmp.ne.s32.totalorder %s88, %s102
      %p104 = scmp.eq.s32.totalorder %s22, 0
      %p105 = por %p103, %p104
      %s107 = sadd.s32 %s106, 1
      %p110 = scmp.eq.s32.totalorder %s16, 1
      %p111 = scmp.ne.s32.totalorder %s106, %s108
      %p112 = scmp.eq.s32.totalorder %s16, 0
      %p113 = por %p111, %p112
      %p114 = scmp.ne.s32.totalorder %s106, %s108
      %p115 = scmp.eq.s32.totalorder %s21, 1
      %p116 = por %p114, %p115
      %p117 = scmp.ne.s32.totalorder %s108, %s109
      %p118 = scmp.eq.s32.totalorder %s21, 0
      %p119 = por %p117, %p118
      %p120 = scmp.ne.s32.totalorder %s108, %s109
      %p121 = scmp.eq.s32.totalorder %s22, 1
      %p122 = por %p120, %p121
      %p124 = scmp.ne.s32.totalorder %s109, %s123
      %p125 = scmp.eq.s32.totalorder %s22, 0
      %p126 = por %p124, %p125
      %s127 = ssub.s32 %s23, %s35
      %s128 = ssub.s32 %s24, %s31
      %s129 = sor.u32 %s127, %s128
      %p130 = scmp.eq.s32.totalorder %s129, 0
      %s132 = sadd.s32 %s131, 1
      %s133 = scalar_select %p130, %s131, %s132
      %p136 = pneg %p130
      %p137 = scmp.eq.s32.totalorder %s16, 1
      %p138 = por %p136, %p137
      %p139 = scmp.ne.s32.totalorder %s131, %s134
      %p140 = scmp.eq.s32.totalorder %s16, 0
      %p141 = por %p139, %p140
      %p142 = scmp.ne.s32.totalorder %s131, %s134
      %p143 = scmp.eq.s32.totalorder %s21, 1
      %p144 = por %p142, %p143
      %p145 = scmp.ne.s32.totalorder %s134, %s135
      %p146 = scmp.eq.s32.totalorder %s21, 0
      %p147 = por %p145, %p146
      %p148 = scmp.ne.s32.totalorder %s134, %s135
      %p149 = scmp.eq.s32.totalorder %s22, 1
      %p150 = por %p148, %p149
      %p152 = scmp.ne.s32.totalorder %s135, %s151
      %p153 = scmp.eq.s32.totalorder %s22, 0
      %p154 = por %p152, %p153
      %p155 = scmp.le.s32.totalorder 1, %s16
      %p156 = scmp.lt.s32.totalorder %s16, 3
      %p157 = pnand %p155, %p156
      %p158 = pneg %p157
      // Predicated region
      $region9: #{tpu_custom_call.1} parent=5 // pred_check
        _
      $region10: #{tpu_custom_call.1} parent=5 // pred_check_branch
        %160 = sbr.rel (%p157) target = $region12
      $region11: #{tpu_custom_call.1} parent=5 // pred_region
        %s161 = ssub.s32 %s16, 1
        // Predicated region
        $region13: #{tpu_custom_call.1} parent=11 // pred_check
          %p162 = pneg %p77
        $region14: #{tpu_custom_call.1} parent=11 // pred_check_branch
          %164 = sbr.rel (%p162) target = $region16
        $region15: #{tpu_custom_call.1} parent=11 // pred_region
          _
        $region16: #{tpu_custom_call.1} parent=11 // pred_fallthru
          _
        // Predicated region
        $region17: #{tpu_custom_call.1} parent=11 // pred_check
          %p165 = pneg %p98
        $region18: #{tpu_custom_call.1} parent=11 // pred_check_branch
          %167 = sbr.rel (%p165) target = $region20
        $region19: #{tpu_custom_call.1} parent=11 // pred_region
          _
        $region20: #{tpu_custom_call.1} parent=11 // pred_fallthru
          _
        // Predicated region
        $region21: #{tpu_custom_call.1} parent=11 // pred_check
          %p168 = pneg %p119
        $region22: #{tpu_custom_call.1} parent=11 // pred_check_branch
          %170 = sbr.rel (%p168) target = $region24
        $region23: #{tpu_custom_call.1} parent=11 // pred_region
          _
        $region24: #{tpu_custom_call.1} parent=11 // pred_fallthru
          _
      $region12: #{tpu_custom_call.1} parent=5 // pred_fallthru
        _
      %p171 = scmp.lt.s32.totalorder %s16, 2
      // Predicated region
      $region25: #{tpu_custom_call.1} parent=5 // pred_check
        %p172 = pneg %p171
      $region26: #{tpu_custom_call.1} parent=5 // pred_check_branch
        %174 = sbr.rel (%p172) target = $region28
      $region27: #{tpu_custom_call.1} parent=5 // pred_region
        // Predicated region
        $region29: #{tpu_custom_call.1} parent=27 // pred_check
          %p175 = pneg %p50
        $region30: #{tpu_custom_call.1} parent=27 // pred_check_branch
          %177 = sbr.rel (%p175) target = $region32
        $region31: #{tpu_custom_call.1} parent=27 // pred_region
          %s178 = sand.u32 %s40, 1
          %s179 = scalar_lea.sflag [#allocation3], %s178
          %s180 = sand.u32 %s40, 1
          %s181 = smul.addr %s180, 2
          %s182 = scalar_lea.vmem [#allocation2], %s181
          %s184 = ssub.s32 32, 32
          %185 = vsyncadd %s179, %s184
          %s186 = sadd.s32 %s24, %s23
          %s187 = smul.addr %s186, 32
          %s188 = scalar_lea.hbm %s0, %s187
          %s190 = sshll.u32 %s182, 4
          %s191 = int_to_ptr.vmem [resolvable:$true] %s190
          %193 = dma.hbm_to_vmem [thread:$0]  %s188, 32, %s191, %s179
        $region32: #{tpu_custom_call.1} parent=27 // pred_fallthru
          _
      $region28: #{tpu_custom_call.1} parent=5 // pred_fallthru
        _
      %p194 = scmp.le.s32.totalorder 1, %s16
      %p195 = scmp.lt.s32.totalorder %s16, 3
      %p196 = pnand %p194, %p195
      %p197 = pneg %p196
      // Predicated region
      $region33: #{tpu_custom_call.1} parent=5 // pred_check
        _
      $region34: #{tpu_custom_call.1} parent=5 // pred_check_branch
        %199 = sbr.rel (%p196) target = $region36
      $region35: #{tpu_custom_call.1} parent=5 // pred_region
        %s200 = ssub.s32 %s16, 1
        %s201 = sand.u32 %s43, 1
        %s202 = scalar_lea.sflag [#allocation3], %s201
        %s203 = sand.u32 %s43, 1
        %s204 = smul.addr %s203, 2
        %s205 = scalar_lea.vmem [#allocation2], %s204
        // Predicated region
        $region37: #{tpu_custom_call.1} parent=35 // pred_check
          %p206 = pneg %p56
        $region38: #{tpu_custom_call.1} parent=35 // pred_check_branch
          %208 = sbr.rel (%p206) target = $region40
        $region39: #{tpu_custom_call.1} parent=35 // pred_region
          %209 = dma.done %s202, 32
        $region40: #{tpu_custom_call.1} parent=35 // pred_fallthru
          _
        %s210 = sand.u32 %s43, 1
        %s211 = scalar_lea.sflag [#allocation3], %s210
        %s212 = sand.u32 %s43, 1
        %s213 = smul.addr %s212, 2
        %s214 = scalar_lea.vmem [#allocation2], %s213
        %p215 = pneg %p56
        %p216 = pneg %p53
        %p217 = pneg %p77
        %p218 = pneg %p74
        %p219 = pneg %p98
        %p220 = pneg %p95
        %p221 = pneg %p119
        %p222 = pneg %p116
        %p223 = pneg %p147
        %p224 = pneg %p144
        %s225 = sand.u32 %s134, 1
        %s226 = scalar_lea.sflag [#allocation4], %s225
        %s227 = sand.u32 %s134, 1
        %s228 = smul.addr %s227, 2
        %s229 = scalar_lea.vmem [#allocation5], %s228
        %v230 = vlaneseq
        %v231 = vshrl.u32 %v230, 7
        %s232 = smul.u32 %s26, 2
        %v233 = vstv %s232
        %v234 = vadd.s32 %v231, %v233
        %v235 = vmul.u32 %v234, 4
        %v236 = vcvt.s32.f32 %v235
        %v237 = vld [vmem:[%s3] sm:$0x1]
        %v239 = vlaneseq
        %v240 = vshrl.u32 %v239, 7
        %v241 = vsub.s32 0, %v240
        %v242 = vrot.slane %v237, %v241
        %v244 = vadd.f32 %v236, %v242
        %v245 = vld [vmem:[%s1] sm:$0x1]
        %v247 = vlaneseq
        %v248 = vshrl.u32 %v247, 7
        %v249 = vsub.s32 0, %v248
        %v250 = vrot.slane %v245, %v249
        %v252 = vmul.f32 %v244, %v250
        %v253 = vld [vmem:[%s2] sm:$0x1]
        %v254 = vand.u32 2147483647, %v252
        %vm255 = vcmp.le.f32.partialorder %v254, 0.7853982
        %vm256 = vcmp.lt.s32.totalorder %v252, 0
        %v257 = vand.u32 %v252, 2139095040
        %v258 = vshrl.u32 %v257, 23
        %v259 = vsub.s32 %v258, 127
        %v260 = vand.u32 2147483647, %v252
        %v261 = vand.u32 %v260, 8388607
        %v262 = vor.u32 %v261, 8388608
        %v263 = vsub.s32 0, %v262
        %v264 = vadd.s32 %v259, 1
        %vm265 = vcmp.gt.s32.totalorder %v264, 0
        %v266 = vsel %vm265, %v264, 0
        %v267 = vshrl.u32 %v266, 5
        %v268 = vand.u32 %v266, 31
        %v269 = vsub.s32 32, %v268
        %v270 = vshrl.u32 683565275, %v269
        %v271 = vshll.u32 683565275, %v268
        %v272 = vshrl.u32 2475754826, %v269
        %v273 = vor.u32 %v271, %v272
        %v274 = vshll.u32 2475754826, %v268
        %v275 = vshrl.u32 2131351028, %v269
        %v276 = vor.u32 %v274, %v275
        %v277 = vshll.u32 2131351028, %v268
        %v278 = vshrl.u32 2102212464, %v269
        %v279 = vor.u32 %v277, %v278
        %v280 = vshll.u32 2102212464, %v268
        %v281 = vshrl.u32 920167782, %v269
        %v282 = vor.u32 %v280, %v281
        %v283 = vshll.u32 920167782, %v268
        %v284 = vshrl.u32 1326507024, %v269
        %v285 = vor.u32 %v283, %v284
        %vm286 = vcmp.lt.s32.totalorder %v267, 1
        %vm287 = vcmp.lt.s32.totalorder %v267, 2
        %vm288 = vcmp.lt.s32.totalorder %v267, 3
        %vm289 = vcmp.lt.s32.totalorder %v267, 4
        %v290 = vsel %vm286, %v270, %v273
        %v291 = vsel %vm289, %v279, 2102212464
        %v292 = vsel %vm288, %v276, %v291
        %v293 = vsel %vm287, %v290, %v292
        %v294 = vsel %vm286, %v273, %v276
        %v295 = vsel %vm289, %v282, 920167782
        %v296 = vsel %vm288, %v279, %v295
        %v297 = vsel %vm287, %v294, %v296
        %v298 = vsel %vm286, %v276, %v279
        %v299 = vsel %vm289, %v285, 1326507024
        %v300 = vsel %vm288, %v282, %v299
        %v301 = vsel %vm287, %v298, %v300
        %v302 = vshll.u32 %v262, 8
        %v303 = vmul.u32.u64.compose %v302, %v301
        %v304 = vextract.low.u32 %v303
        %v305 = vextract.high.u32 %v303
        %v306 = vmul.u32.u64.compose %v302, %v297
        %v307 = vextract.low.u32 %v306
        %v308 = vextract.high.u32 %v306
        %v309 = vmul.u32 %v302, %v293
        %v310 = vadd.s32 %v305, %v307
        %vm311 = vc.u32 %v305, %v307
        %v312 = vadd.s32 %v308, 1
        %v313 = vsel %vm311, %v312, %v308
        %v314 = vadd.s32 %v309, %v313
        %v315 = vadd.s32 %v314, 536870912
        %v316 = vshrl.u32 %v315, 30
        %v317 = vshll.u32 %v316, 30
        %v318 = vsub.s32 %v314, %v317
        %vm319 = vcmp.lt.s32.totalorder %v318, 0
        %v320 = vsub.s32 0, %v318
        %v321 = vsel %vm319, %v320, %v318
        %v322 = vclz %v321
        %v323 = vsub.s32 %v322, 2
        %vm324 = vcmp.gt.s32.totalorder 0, %v323
        %v325 = vsel %vm324, 0, %v323
        %v326 = vsub.s32 32, %v325
        %v327 = vshll.u32 %v318, %v325
        %v328 = vshrl.u32 %v310, %v326
        %v329 = vor.u32 %v327, %v328
        %v330 = vsub.s32 4294967266, %v325
        %v331 = vadd.s32 %v330, 127
        %v332 = vshll.u32 %v331, 23
        %v333 = vor.u32 4788187, %v332
        %v334 = vand.u32 2147483647, %v333
        %v336 = vcvt.s32.f32 %v329
        %v337 = vmul.f32 %v336, %v334
        %v338 = vxor.u32 %v337, 2147483648
        %v339 = vsel %vm256, %v338, %v337
        %v340 = vsub.s32 4, %v316
        %v341 = vsel %vm256, %v340, %v316
        %v342 = vsel %vm255, %v252, %v339
        %v343 = vsel %vm255, 0, %v341
        %v344 = vcosq.f32.pop %v342
        %v345 = vsinq.f32.pop %v342
        %vm346 = vweird.f32 %v252
        %v347 = vadd.s32 %v343, 3
        %v348 = vand.u32 %v347, 3
        %vm349 = vcmp.lt.s32.totalorder %v348, 2
        %vm350 = vcmp.eq.s32.totalorder %v348, 0
        %v351 = vxor.u32 %v345, 2147483648
        %v352 = vsel %vm350, %v344, %v351
        %vm353 = vcmp.eq.s32.totalorder %v348, 2
        %v354 = vxor.u32 %v344, 2147483648
        %v355 = vsel %vm353, %v354, %v345
        %v356 = vsel %vm349, %v352, %v355
        %v357 = vsel %vm346, nan, %v356
        %v359 = vlaneseq
        %v360 = vshrl.u32 %v359, 7
        %v361 = vsub.s32 0, %v360
        %v362 = vrot.slane %v253, %v361
        %v364 = vmul.f32 %v362, %v357
        %v365 = vsub.f32 1.0, %v253
        %v366 = vand.u32 2147483647, %v252
        %vm367 = vcmp.le.f32.partialorder %v366, 0.7853982
        %vm368 = vcmp.lt.s32.totalorder %v252, 0
        %v369 = vand.u32 %v252, 2139095040
        %v370 = vshrl.u32 %v369, 23
        %v371 = vsub.s32 %v370, 127
        %v372 = vand.u32 2147483647, %v252
        %v373 = vand.u32 %v372, 8388607
        %v374 = vor.u32 %v373, 8388608
        %v375 = vsub.s32 0, %v374
        %v376 = vadd.s32 %v371, 1
        %vm377 = vcmp.gt.s32.totalorder %v376, 0
        %v378 = vsel %vm377, %v376, 0
        %v379 = vshrl.u32 %v378, 5
        %v380 = vand.u32 %v378, 31
        %v381 = vsub.s32 32, %v380
        %v382 = vshrl.u32 683565275, %v381
        %v383 = vshll.u32 683565275, %v380
        %v384 = vshrl.u32 2475754826, %v381
        %v385 = vor.u32 %v383, %v384
        %v386 = vshll.u32 2475754826, %v380
        %v387 = vshrl.u32 2131351028, %v381
        %v388 = vor.u32 %v386, %v387
        %v389 = vshll.u32 2131351028, %v380
        %v390 = vshrl.u32 2102212464, %v381
        %v391 = vor.u32 %v389, %v390
        %v392 = vshll.u32 2102212464, %v380
        %v393 = vshrl.u32 920167782, %v381
        %v394 = vor.u32 %v392, %v393
        %v395 = vshll.u32 920167782, %v380
        %v396 = vshrl.u32 1326507024, %v381
        %v397 = vor.u32 %v395, %v396
        %vm398 = vcmp.lt.s32.totalorder %v379, 1
        %vm399 = vcmp.lt.s32.totalorder %v379, 2
        %vm400 = vcmp.lt.s32.totalorder %v379, 3
        %vm401 = vcmp.lt.s32.totalorder %v379, 4
        %v402 = vsel %vm398, %v382, %v385
        %v403 = vsel %vm401, %v391, 2102212464
        %v404 = vsel %vm400, %v388, %v403
        %v405 = vsel %vm399, %v402, %v404
        %v406 = vsel %vm398, %v385, %v388
        %v407 = vsel %vm401, %v394, 920167782
        %v408 = vsel %vm400, %v391, %v407
        %v409 = vsel %vm399, %v406, %v408
        %v410 = vsel %vm398, %v388, %v391
        %v411 = vsel %vm401, %v397, 1326507024
        %v412 = vsel %vm400, %v394, %v411
        %v413 = vsel %vm399, %v410, %v412
        %v414 = vshll.u32 %v374, 8
        %v415 = vmul.u32.u64.compose %v414, %v413
        %v416 = vextract.low.u32 %v415
        %v417 = vextract.high.u32 %v415
        %v418 = vmul.u32.u64.compose %v414, %v409
        %v419 = vextract.low.u32 %v418
        %v420 = vextract.high.u32 %v418
        %v421 = vmul.u32 %v414, %v405
        %v422 = vadd.s32 %v417, %v419
        %vm423 = vc.u32 %v417, %v419
        %v424 = vadd.s32 %v420, 1
        %v425 = vsel %vm423, %v424, %v420
        %v426 = vadd.s32 %v421, %v425
        %v427 = vadd.s32 %v426, 536870912
        %v428 = vshrl.u32 %v427, 30
        %v429 = vshll.u32 %v428, 30
        %v430 = vsub.s32 %v426, %v429
        %vm431 = vcmp.lt.s32.totalorder %v430, 0
        %v432 = vsub.s32 0, %v430
        %v433 = vsel %vm431, %v432, %v430
        %v434 = vclz %v433
        %v435 = vsub.s32 %v434, 2
        %vm436 = vcmp.gt.s32.totalorder 0, %v435
        %v437 = vsel %vm436, 0, %v435
        %v438 = vsub.s32 32, %v437
        %v439 = vshll.u32 %v430, %v437
        %v440 = vshrl.u32 %v422, %v438
        %v441 = vor.u32 %v439, %v440
        %v442 = vsub.s32 4294967266, %v437
        %v443 = vadd.s32 %v442, 127
        %v444 = vshll.u32 %v443, 23
        %v445 = vor.u32 4788187, %v444
        %v446 = vand.u32 2147483647, %v445
        %v448 = vcvt.s32.f32 %v441
        %v449 = vmul.f32 %v448, %v446
        %v450 = vxor.u32 %v449, 2147483648
        %v451 = vsel %vm368, %v450, %v449
        %v452 = vsub.s32 4, %v428
        %v453 = vsel %vm368, %v452, %v428
        %v454 = vsel %vm367, %v252, %v451
        %v455 = vsel %vm367, 0, %v453
        %v456 = vcosq.f32.pop %v454
        %v457 = vsinq.f32.pop %v454
        %vm458 = vweird.f32 %v252
        %v459 = vand.u32 %v455, 3
        %vm460 = vcmp.lt.s32.totalorder %v459, 2
        %vm461 = vcmp.eq.s32.totalorder %v459, 0
        %v462 = vxor.u32 %v457, 2147483648
        %v463 = vsel %vm461, %v456, %v462
        %vm464 = vcmp.eq.s32.totalorder %v459, 2
        %v465 = vxor.u32 %v456, 2147483648
        %v466 = vsel %vm464, %v465, %v457
        %v467 = vsel %vm460, %v463, %v466
        %v468 = vsel %vm458, nan, %v467
        %v470 = vlaneseq
        %v471 = vshrl.u32 %v470, 7
        %v472 = vsub.s32 0, %v471
        %v473 = vrot.slane %v365, %v472
        %v475 = vmul.f32 %v473, %v468
        %v476 = vadd.f32 %v364, %v475
        %v477 = vld [vmem:[%s205] sm:$0x3]
        %v478 = vadd.f32 %v477, %v476
        %479 = vst [vmem:[%s229] sm:$0x3] %v478
        %s480 = sand.u32 %s134, 1
        %s481 = scalar_lea.sflag [#allocation4], %s480
        %s482 = sand.u32 %s134, 1
        %s483 = smul.addr %s482, 2
        %s484 = scalar_lea.vmem [#allocation5], %s483
        // Predicated region
        $region41: #{tpu_custom_call.1} parent=35 // pred_check
          %p485 = pneg %p144
        $region42: #{tpu_custom_call.1} parent=35 // pred_check_branch
          %487 = sbr.rel (%p485) target = $region44
        $region43: #{tpu_custom_call.1} parent=35 // pred_region
          %s489 = ssub.s32 32, 32
          %490 = vsyncadd %s481, %s489
          %s491 = sadd.s32 %s26, %s25
          %s492 = smul.addr %s491, 32
          %s493 = scalar_lea.hbm %s4, %s492
          %s495 = sshll.u32 %s484, 4
          %s496 = int_to_ptr.vmem [resolvable:$true] %s495
          %498 = dma.vmem_to_hbm [thread:$0]  %s496, 32, %s493, %s481
        $region44: #{tpu_custom_call.1} parent=35 // pred_fallthru
          _
      $region36: #{tpu_custom_call.1} parent=5 // pred_fallthru
        _
      %p499 = scmp.le.s32.totalorder 2, %s16
      // Predicated region
      $region45: #{tpu_custom_call.1} parent=5 // pred_check
        %p500 = pneg %p499
      $region46: #{tpu_custom_call.1} parent=5 // pred_check_branch
        %502 = sbr.rel (%p500) target = $region48
      $region47: #{tpu_custom_call.1} parent=5 // pred_region
        %s503 = ssub.s32 %s16, 2
        // Predicated region
        $region49: #{tpu_custom_call.1} parent=47 // pred_check
          %p504 = pneg %p150
        $region50: #{tpu_custom_call.1} parent=47 // pred_check_branch
          %506 = sbr.rel (%p504) target = $region52
        $region51: #{tpu_custom_call.1} parent=47 // pred_region
          %s507 = sand.u32 %s135, 1
          %s508 = scalar_lea.sflag [#allocation4], %s507
          %s509 = sand.u32 %s135, 1
          %s510 = smul.addr %s509, 2
          %s511 = scalar_lea.vmem [#allocation5], %s510
          %512 = dma.done %s508, 32
        $region52: #{tpu_custom_call.1} parent=47 // pred_fallthru
          _
      $region48: #{tpu_custom_call.1} parent=5 // pred_fallthru
        _
    $region6: #{tpu_custom_call.1} parent=1 // loop_footer
      %s20 = sadd.s32 1, %s16
    $region7: #{tpu_custom_call.1} parent=1 // loop_footer_branch
      %15 = sbr.rel target = $region3
    $region8: #{tpu_custom_call.1} parent=1 // loop_exit
      _
    %513 = vsyncpa [#allocation3], 1
    %s514 = scalar_lea.sflag [#allocation3], 1
    %515 = vsyncpa %s514, 1
    %516 = vsyncpa [#allocation4], 1
    %s517 = scalar_lea.sflag [#allocation4], 1
    %518 = vsyncpa %s517, 1

// kernel: tpu_custom_call.1
$region0: #{tpu_custom_call.1}
  #allocation0 [shape = 'u32[]', space=smem, size = 0x4, offset = 0x4, fixed_abs, tag = 'smem constant byte address 0x4 - core index']
  #allocation1 [shape = 'u32[144,128]{1,0:T(1,128)}', space=vmem, size = 0x12000, scoped, tag = 'internal scratch']
  %s0 = inlined_call_operand.vmem [shape: f32[2,8,32], index: 0, kind: input, shape index: {}]
  %s1 = inlined_call_operand.vmem [shape: f32[1,64,32], index: 1, kind: input, shape index: {}]
  %s2 = inlined_call_operand.hbm [shape: f32[2,8,32], index: 2, kind: output, shape index: {}]
  %s3 = sld [smem:[#allocation0]]
  $region41: #{tpu_custom_call.1} parent=0
    _
  %s5 = ssub.s32 1, %s3
  %s6 = scalar_select 0, %s5, %s3
  $region1: #{tpu_custom_call.1} parent=0
    #allocation2 [shape = 'u8[8192]{0}', space=vmem, size = 0x2000, scoped, tag = 'output window, operand 0']
    #allocation3 [shape = 's32[2]{0}', space=sflag, size = 0x8, scoped, tag = 'scoped memory for tpu_custom_call.1']
    %7 = vsyncpa [#allocation3], 0
    %s8 = scalar_lea.sflag [#allocation3], 1
    %9 = vsyncpa %s8, 0
    loop: start=0, step=1, limit=4
    $region2: #{tpu_custom_call.1} parent=1 // loop_pre_header
      _
    $region3: #{tpu_custom_call.1} parent=1 // loop_header
      %s11 = sphi 0, %s15
      %p12 = scmp.ge.s32.totalorder %s11, 4
      %s18 = sphi 0, %s30
      %s19 = sphi 0, %s26
      %s20 = sphi 0, %s18
      %s21 = sphi 0, %s19
      %s22 = sphi 0, %s20
      %s23 = sphi 0, %s21
      %s35 = sphi 0, %s37
      %s38 = sphi 0, %s35
      %s39 = sphi 0, %s38
      %s55 = sphi 0, %s39
      %s61 = sphi 0, %s63
      %s64 = sphi 0, %s61
      %s65 = sphi 0, %s64
      %s81 = sphi 0, %s65
      %s89 = sphi 0, %s91
      %s92 = sphi 0, %s89
      %s93 = sphi 0, %s92
      %s109 = sphi 0, %s93
    $region4: #{tpu_custom_call.1} parent=1 // loop_header_branch
      %14 = sbr.rel (%p12) target = $region8
    $region5: #{tpu_custom_call.1} parent=1 // loop_body
      %s16 = ssub.s32 %s11, 1
      %s17 = ssub.s32 %s11, 2
      %s24 = sadd.s32 1, %s19
      %p25 = scmp.ge.s32.totalorder %s24, 2
      %s26 = scalar_select %p25, 0, %s24
      %s27 = sadd.s32 1, %s18
      %s28 = scalar_select %p25, %s27, %s18
      %p29 = scmp.ge.s32.totalorder %s28, 1
      %s30 = scalar_select %p29, 0, %s28
      %s31 = ssub.s32 %s19, %s26
      %s32 = ssub.s32 %s18, %s30
      %s33 = sor.u32 %s31, %s32
      %p34 = scmp.eq.s32.totalorder %s33, 0
      %s36 = sadd.s32 %s35, 1
      %s37 = scalar_select %p34, %s35, %s36
      %p40 = pneg %p34
      %p41 = scmp.eq.s32.totalorder %s11, 1
      %p42 = por %p40, %p41
      %p43 = scmp.ne.s32.totalorder %s35, %s38
      %p44 = scmp.eq.s32.totalorder %s11, 0
      %p45 = por %p43, %p44
      %p46 = scmp.ne.s32.totalorder %s35, %s38
      %p47 = scmp.eq.s32.totalorder %s16, 1
      %p48 = por %p46, %p47
      %p49 = scmp.ne.s32.totalorder %s38, %s39
      %p50 = scmp.eq.s32.totalorder %s16, 0
      %p51 = por %p49, %p50
      %p52 = scmp.ne.s32.totalorder %s38, %s39
      %p53 = scmp.eq.s32.totalorder %s17, 1
      %p54 = por %p52, %p53
      %p56 = scmp.ne.s32.totalorder %s39, %s55
      %p57 = scmp.eq.s32.totalorder %s17, 0
      %p58 = por %p56, %p57
      %s59 = ssub.s32 %s18, %s30
      %p60 = scmp.eq.s32.totalorder %s59, 0
      %s62 = sadd.s32 %s61, 1
      %s63 = scalar_select %p60, %s61, %s62
      %p66 = pneg %p60
      %p67 = scmp.eq.s32.totalorder %s11, 1
      %p68 = por %p66, %p67
      %p69 = scmp.ne.s32.totalorder %s61, %s64
      %p70 = scmp.eq.s32.totalorder %s11, 0
      %p71 = por %p69, %p70
      %p72 = scmp.ne.s32.totalorder %s61, %s64
      %p73 = scmp.eq.s32.totalorder %s16, 1
      %p74 = por %p72, %p73
      %p75 = scmp.ne.s32.totalorder %s64, %s65
      %p76 = scmp.eq.s32.totalorder %s16, 0
      %p77 = por %p75, %p76
      %p78 = scmp.ne.s32.totalorder %s64, %s65
      %p79 = scmp.eq.s32.totalorder %s17, 1
      %p80 = por %p78, %p79
      %p82 = scmp.ne.s32.totalorder %s65, %s81
      %p83 = scmp.eq.s32.totalorder %s17, 0
      %p84 = por %p82, %p83
      %s85 = ssub.s32 %s19, %s26
      %s86 = ssub.s32 %s18, %s30
      %s87 = sor.u32 %s85, %s86
      %p88 = scmp.eq.s32.totalorder %s87, 0
      %s90 = sadd.s32 %s89, 1
      %s91 = scalar_select %p88, %s89, %s90
      %p94 = pneg %p88
      %p95 = scmp.eq.s32.totalorder %s11, 1
      %p96 = por %p94, %p95
      %p97 = scmp.ne.s32.totalorder %s89, %s92
      %p98 = scmp.eq.s32.totalorder %s11, 0
      %p99 = por %p97, %p98
      %p100 = scmp.ne.s32.totalorder %s89, %s92
      %p101 = scmp.eq.s32.totalorder %s16, 1
      %p102 = por %p100, %p101
      %p103 = scmp.ne.s32.totalorder %s92, %s93
      %p104 = scmp.eq.s32.totalorder %s16, 0
      %p105 = por %p103, %p104
      %p106 = scmp.ne.s32.totalorder %s92, %s93
      %p107 = scmp.eq.s32.totalorder %s17, 1
      %p108 = por %p106, %p107
      %p110 = scmp.ne.s32.totalorder %s93, %s109
      %p111 = scmp.eq.s32.totalorder %s17, 0
      %p112 = por %p110, %p111
      %p113 = scmp.le.s32.totalorder 1, %s11
      %p114 = scmp.lt.s32.totalorder %s11, 3
      %p115 = pnand %p113, %p114
      %p116 = pneg %p115
      // Predicated region
      $region9: #{tpu_custom_call.1} parent=5 // pred_check
        _
      $region10: #{tpu_custom_call.1} parent=5 // pred_check_branch
        %118 = sbr.rel (%p115) target = $region12
      $region11: #{tpu_custom_call.1} parent=5 // pred_region
        %s119 = ssub.s32 %s11, 1
        // Predicated region
        $region13: #{tpu_custom_call.1} parent=11 // pred_check
          %p120 = pneg %p77
        $region14: #{tpu_custom_call.1} parent=11 // pred_check_branch
          %122 = sbr.rel (%p120) target = $region16
        $region15: #{tpu_custom_call.1} parent=11 // pred_region
          %p123 = scmp.lt.s32.totalorder %s20, 7
          %s124 = scalar_select %p123, %s20, 7
          %s125 = smul.addr %s124, 8
          %s126 = scalar_lea.vmem %s1, %s125
        $region16: #{tpu_custom_call.1} parent=11 // pred_fallthru
          _
      $region12: #{tpu_custom_call.1} parent=5 // pred_fallthru
        _
      %p127 = scmp.lt.s32.totalorder %s11, 2
      // Predicated region
      $region17: #{tpu_custom_call.1} parent=5 // pred_check
        %p128 = pneg %p127
      $region18: #{tpu_custom_call.1} parent=5 // pred_check_branch
        %130 = sbr.rel (%p128) target = $region20
      $region19: #{tpu_custom_call.1} parent=5 // pred_region
        // Predicated region
        $region21: #{tpu_custom_call.1} parent=19 // pred_check
          %p131 = pneg %p45
        $region22: #{tpu_custom_call.1} parent=19 // pred_check_branch
          %133 = sbr.rel (%p131) target = $region24
        $region23: #{tpu_custom_call.1} parent=19 // pred_region
          %p134 = scmp.lt.s32.totalorder %s19, 1
          %s135 = scalar_select %p134, %s19, 1
          %p136 = scmp.lt.s32.totalorder %s18, 0
          %s137 = scalar_select %p136, %s18, 0
          %s138 = sadd.s32 %s137, %s135
          %s139 = smul.addr %s138, 8
          %s140 = scalar_lea.vmem %s0, %s139
        $region24: #{tpu_custom_call.1} parent=19 // pred_fallthru
          _
      $region20: #{tpu_custom_call.1} parent=5 // pred_fallthru
        _
      %p141 = scmp.le.s32.totalorder 1, %s11
      %p142 = scmp.lt.s32.totalorder %s11, 3
      %p143 = pnand %p141, %p142
      %p144 = pneg %p143
      // Predicated region
      $region25: #{tpu_custom_call.1} parent=5 // pred_check
        _
      $region26: #{tpu_custom_call.1} parent=5 // pred_check_branch
        %146 = sbr.rel (%p143) target = $region28
      $region27: #{tpu_custom_call.1} parent=5 // pred_region
        %s147 = ssub.s32 %s11, 1
        %p148 = scmp.lt.s32.totalorder %s21, 1
        %s149 = scalar_select %p148, %s21, 1
        %p150 = scmp.lt.s32.totalorder %s20, 0
        %s151 = scalar_select %p150, %s20, 0
        %s152 = sadd.s32 %s151, %s149
        %s153 = smul.addr %s152, 8
        %s154 = scalar_lea.vmem %s0, %s153
        %p155 = pneg %p51
        %p156 = pneg %p48
        %p157 = scmp.lt.s32.totalorder %s20, 7
        %s158 = scalar_select %p157, %s20, 7
        %s159 = smul.addr %s158, 8
        %s160 = scalar_lea.vmem %s1, %s159
        %p161 = pneg %p77
        %p162 = pneg %p74
        %p163 = pneg %p105
        %p164 = pneg %p102
        %s165 = sand.u32 %s92, 1
        %s166 = scalar_lea.sflag [#allocation3], %s165
        %s167 = sand.u32 %s92, 1
        %s168 = smul.addr %s167, 8
        %s169 = scalar_lea.vmem [#allocation2], %s168
        %p170 = scmp.lt.s32.totalorder %s21, 1
        %s171 = scalar_select %p170, %s21, 1
        %p172 = scmp.lt.s32.totalorder %s20, 0
        %s173 = scalar_select %p172, %s20, 0
        %s174 = sadd.s32 %s173, %s171
        %s175 = smul.addr %s174, 8
        %s176 = scalar_lea.vmem %s0, %s175
        %p177 = scmp.lt.s32.totalorder %s20, 7
        %s178 = scalar_select %p177, %s20, 7
        %s179 = smul.addr %s178, 8
        %s180 = scalar_lea.vmem %s1, %s179
        %v181 = vld [vmem:[%s176] sm:$0xff]
        %v182 = vld [vmem:[%s180] sm:$0xff]
        %v183 = vadd.f32 %v181, %v182
        %vm184 = vcmask 261120
        %185 = vst.msk [vmem:[%s169] sm:$0xff] %vm184, %v183
        %s186 = sand.u32 %s92, 1
        %s187 = scalar_lea.sflag [#allocation3], %s186
        %s188 = sand.u32 %s92, 1
        %s189 = smul.addr %s188, 8
        %s190 = scalar_lea.vmem [#allocation2], %s189
        // Predicated region
        $region29: #{tpu_custom_call.1} parent=27 // pred_check
          %p191 = pneg %p102
        $region30: #{tpu_custom_call.1} parent=27 // pred_check_branch
          %193 = sbr.rel (%p191) target = $region32
        $region31: #{tpu_custom_call.1} parent=27 // pred_region
          %s195 = ssub.s32 128, 128
          %196 = vsyncadd %s187, %s195
          %s197 = sadd.s32 %s20, %s21
          %s198 = smul.addr %s197, 128
          %s199 = scalar_lea.hbm %s2, %s198
          %s201 = sshll.u32 %s190, 4
          %s202 = int_to_ptr.vmem [resolvable:$true] %s201
          %204 = dma.vmem_to_hbm [thread:$0]  %s202, 128, %s199, %s187
        $region32: #{tpu_custom_call.1} parent=27 // pred_fallthru
          _
      $region28: #{tpu_custom_call.1} parent=5 // pred_fallthru
        _
      %p205 = scmp.le.s32.totalorder 2, %s11
      // Predicated region
      $region33: #{tpu_custom_call.1} parent=5 // pred_check
        %p206 = pneg %p205
      $region34: #{tpu_custom_call.1} parent=5 // pred_check_branch
        %208 = sbr.rel (%p206) target = $region36
      $region35: #{tpu_custom_call.1} parent=5 // pred_region
        %s209 = ssub.s32 %s11, 2
        // Predicated region
        $region37: #{tpu_custom_call.1} parent=35 // pred_check
          %p210 = pneg %p108
        $region38: #{tpu_custom_call.1} parent=35 // pred_check_branch
          %212 = sbr.rel (%p210) target = $region40
        $region39: #{tpu_custom_call.1} parent=35 // pred_region
          %s213 = sand.u32 %s93, 1
          %s214 = scalar_lea.sflag [#allocation3], %s213
          %s215 = sand.u32 %s93, 1
          %s216 = smul.addr %s215, 8
          %s217 = scalar_lea.vmem [#allocation2], %s216
          %218 = dma.done %s214, 128
        $region40: #{tpu_custom_call.1} parent=35 // pred_fallthru
          _
      $region36: #{tpu_custom_call.1} parent=5 // pred_fallthru
        _
    $region6: #{tpu_custom_call.1} parent=1 // loop_footer
      %s15 = sadd.s32 1, %s11
    $region7: #{tpu_custom_call.1} parent=1 // loop_footer_branch
      %10 = sbr.rel target = $region3
    $region8: #{tpu_custom_call.1} parent=1 // loop_exit
      _
    %219 = vsyncpa [#allocation3], 1
    %s220 = scalar_lea.sflag [#allocation3], 1
    %221 = vsyncpa %s220, 1

</llo_original>
